<compile_context>
chip_gen: v6e
topology: v6e:2x2x1
jax: 0.10.0
libtpu: 0.0.40
codegen_flags: <defaults>
</compile_context>

<pallas_src>
import jax
import jax.numpy as jnp
from jax.experimental import pallas as pl
from jax.experimental.pallas import tpu as pltpu


def _identity_copy_kernel(x_ref, o_ref):
    # Pure pass-through: copy the current VMEM tile to the output tile.
    o_ref[...] = x_ref[...]


# Per-buffer tile target for the (opt-in) copy path.  With default
# double-buffering of input + output, peak VMEM is ~4x this (~8 MiB), which
# fits the scoped-VMEM limit on v5e (16 MiB), v6e (32 MiB) and v7x (32 MiB).
_TARGET_TILE_BYTES = 2 * 1024 * 1024


def _pallas_identity(x):
    """Materializing identity: stream x through a Pallas TPU copy kernel."""
    shape = x.shape
    total = 1
    for d in shape:
        total *= d
    if total == 0:
        return x
    itemsize = jnp.dtype(x.dtype).itemsize

    # Widest lane width (multiple of 128) that exactly divides the element
    # count, so the 2-D view is a pure dim-merge reshape (no pad / no slice).
    lane = 0
    for cand in (2048, 1024, 512, 256, 128):
        if total % cand == 0:
            lane = cand
            break

    if lane != 0 and (total // lane) >= 8:
        rows = total // lane
        x2d = x.reshape(rows, lane)  # zero-copy contiguous dim merge

        # Biggest lane-dense tile up to ~_TARGET_TILE_BYTES, multiple of 8
        # sublanes.  No forced multi-step split: single-TC chips (v5e/v6e)
        # run the grid sequentially, so one big tile is the optimum.
        block_rows = max(8, (_TARGET_TILE_BYTES // (lane * itemsize)) // 8 * 8)
        block_rows = min(block_rows, (rows // 8) * 8)
        grid_steps = pl.cdiv(rows, block_rows)

        out2d = pl.pallas_call(
            _identity_copy_kernel,
            out_shape=jax.ShapeDtypeStruct((rows, lane), x2d.dtype),
            grid=(grid_steps,),
            in_specs=[pl.BlockSpec((block_rows, lane), lambda i: (i, 0))],
            out_specs=pl.BlockSpec((block_rows, lane), lambda i: (i, 0)),
            compiler_params=pltpu.CompilerParams(
                dimension_semantics=("parallel",),  # lets v7x shard the axis
            ),
        )(x2d)
        return out2d.reshape(shape)

    # Lane-awkward / tiny fallback: single full-array block (legal because the
    # block shape equals the full array dims), one grid step.
    x2d = x.reshape(1, total)
    out2d = pl.pallas_call(
        _identity_copy_kernel,
        out_shape=jax.ShapeDtypeStruct((1, total), x2d.dtype),
        grid=(1,),
        in_specs=[pl.BlockSpec((1, total), lambda i: (0, 0))],
        out_specs=pl.BlockSpec((1, total), lambda i: (0, 0)),
    )(x2d)
    return out2d.reshape(shape)


def dummy_forward(x, use_pallas=False):
    """Identity forward of Dummy (returns the input unchanged).

    Default path launches no kernel: an identity is a zero-cost alias, so any
    copy kernel would only add HBM traffic and dispatch overhead on every TPU
    generation.  Set use_pallas=True to route through the Pallas copy kernel
    (e.g. to force materialization of the data into a fresh buffer).
    """
    if use_pallas:
        return _pallas_identity(x)
    return x


if __name__ == "__main__":
    key = jax.random.PRNGKey(0)

    # Small NCHW input consistent with the module: batch=2, C=4, 16x16.
    x = jax.random.normal(key, (2, 4, 16, 16), dtype=jnp.float32)

    # Default (optimal) path: zero-cost identity, no kernel launch.
    y = dummy_forward(x)
    jax.block_until_ready(y)
    assert y.shape == x.shape and y.dtype == x.dtype
    assert bool(jnp.allclose(y, x)), "identity mismatch (default path)"

    # Opt-in Pallas path: exercise the copy kernel once.
    # total = 2048 elems -> lane=2048 not divisible? 2048 % 2048 == 0 -> rows=1
    # falls through lane candidates to lane=256 -> rows=8: one (8,256) tile.
    y_k = dummy_forward(x, use_pallas=True)
    jax.block_until_ready(y_k)
    assert y_k.shape == x.shape and y_k.dtype == x.dtype
    assert bool(jnp.allclose(y_k, x)), "identity mismatch (pallas path)"

    print("KERNEL_OK")
</pallas_src>

<mosaic_0001>
module attributes {stable_mosaic.version = 11 : i64} {
  func.func @_identity_copy_kernel(%arg0: i32, %arg1: memref<1x2048xf32, #tpu.memory_space<vmem>>, %arg2: memref<1x2048xf32, #tpu.memory_space<vmem>>) attributes {dimension_semantics = [#tpu.dimension_semantics<arbitrary>], iteration_bounds = array<i64: 1>, scalar_prefetch = 0 : i64, scratch_operands = 0 : i64, tpu.core_type = #tpu.core_type<tc>, window_params = [{pipeline_mode = #tpu.pipeline_mode<synchronous>, transform_indices = @transform_0, window_bounds = array<i64: 1, 2048>}, {pipeline_mode = #tpu.pipeline_mode<synchronous>, transform_indices = @transform_1, window_bounds = array<i64: 1, 2048>}]} {
    %c0 = arith.constant 0 : index
    %c0_0 = arith.constant 0 : index
    %0 = vector.load %arg1[%c0, %c0_0] : memref<1x2048xf32, #tpu.memory_space<vmem>>, vector<1x2048xf32>
    %c0_1 = arith.constant 0 : index
    %c0_2 = arith.constant 0 : index
    %1 = vector.load %arg2[%c0_1, %c0_2] : memref<1x2048xf32, #tpu.memory_space<vmem>>, vector<1x2048xf32>
    tpu.vector_store %arg2[%c0_1, %c0_2], %0 {strides = array<i32>} : memref<1x2048xf32, #tpu.memory_space<vmem>>, vector<1x2048xf32>,
    return
  }
  func.func @transform_0(%arg0: i32) -> (i32, i32) {
    %c0_i32 = arith.constant 0 : i32
    %c0_i32_0 = arith.constant 0 : i32
    %c0_i32_1 = arith.constant 0 : i32
    return %c0_i32, %c0_i32_0 : i32, i32
  }
  func.func @transform_1(%arg0: i32) -> (i32, i32) {
    %c0_i32 = arith.constant 0 : i32
    %c0_i32_0 = arith.constant 0 : i32
    %c0_i32_1 = arith.constant 0 : i32
    return %c0_i32, %c0_i32_0 : i32, i32
  }
}

</mosaic_0001>

<llo_original>
// kernel: tpu_custom_call.1
$region0: #{tpu_custom_call.1}
  #allocation0 [shape = 'u32[]', space=smem, size = 0x4, offset = 0x4, fixed_abs, tag = 'smem constant byte address 0x4 - core index']
  #allocation1 [shape = 'u32[144,128]{1,0:T(1,128)}', space=vmem, size = 0x12000, scoped, tag = 'internal scratch']
  %s0 = inlined_call_operand.hbm [shape: f32[1,2048], index: 0, kind: input, shape index: {}]
  %s1 = inlined_call_operand.hbm [shape: f32[1,2048], index: 1, kind: output, shape index: {}]
  %s2 = sld [smem:[#allocation0]]
  $region18: #{tpu_custom_call.1} parent=0
    _
  %s4 = ssub.s32 1, %s2
  %s5 = scalar_select 0, %s4, %s2
  $region1: #{tpu_custom_call.1} parent=0
    #allocation2 [shape = 'u8[8192]{0}', space=vmem, size = 0x2000, scoped, tag = 'input window, operand 0, single buffered']
    #allocation3 [shape = 's32[1]{0}', space=sflag, size = 0x4, scoped, tag = 'scoped memory for tpu_custom_call.1']
    #allocation4 [shape = 's32[1]{0}', space=sflag, size = 0x4, scoped, tag = 'scoped memory for tpu_custom_call.1']
    #allocation5 [shape = 'u8[8192]{0}', space=vmem, size = 0x2000, scoped, tag = 'output window, operand 0, single buffered']
    %6 = vsyncpa [#allocation3], 0
    %7 = vsyncpa [#allocation4], 0
    // Predicated region
    $region2: #{tpu_custom_call.1} parent=1 // pred_check
      _
    $region3: #{tpu_custom_call.1} parent=1 // pred_check_branch
      %9 = sbr.rel (0) target = $region5
    $region4: #{tpu_custom_call.1} parent=1 // pred_region
      %s11 = ssub.s32 256, 256
      %12 = vsyncadd [#allocation3], %s11
      %s14 = sshll.u32 [#allocation2], 4
      %s15 = int_to_ptr.vmem [resolvable:$true] %s14
      %17 = dma.hbm_to_vmem [thread:$0]  %s0, 256, %s15, [#allocation3]
    $region5: #{tpu_custom_call.1} parent=1 // pred_fallthru
      _
    // Predicated region
    $region6: #{tpu_custom_call.1} parent=1 // pred_check
      _
    $region7: #{tpu_custom_call.1} parent=1 // pred_check_branch
      %19 = sbr.rel (0) target = $region9
    $region8: #{tpu_custom_call.1} parent=1 // pred_region
      %20 = dma.done [#allocation3], 256
    $region9: #{tpu_custom_call.1} parent=1 // pred_fallthru
      _
    %v21 = vld [vmem:[#allocation2] sm:$0xff]
    %v22 = vld [vmem:[#allocation2 + $0x8] sm:$0xff]
    %23 = vst [vmem:[#allocation5] sm:$0xff] %v21
    %24 = vst [vmem:[#allocation5 + $0x8] sm:$0xff] %v22
    // Predicated region
    $region10: #{tpu_custom_call.1} parent=1 // pred_check
      _
    $region11: #{tpu_custom_call.1} parent=1 // pred_check_branch
      %26 = sbr.rel (0) target = $region13
    $region12: #{tpu_custom_call.1} parent=1 // pred_region
      %s28 = ssub.s32 256, 256
      %29 = vsyncadd [#allocation4], %s28
      %s31 = sshll.u32 [#allocation5], 4
      %s32 = int_to_ptr.vmem [resolvable:$true] %s31
      %34 = dma.vmem_to_hbm [thread:$0]  %s32, 256, %s1, [#allocation4]
    $region13: #{tpu_custom_call.1} parent=1 // pred_fallthru
      _
    // Predicated region
    $region14: #{tpu_custom_call.1} parent=1 // pred_check
      _
    $region15: #{tpu_custom_call.1} parent=1 // pred_check_branch
      %36 = sbr.rel (0) target = $region17
    $region16: #{tpu_custom_call.1} parent=1 // pred_region
      %37 = dma.done [#allocation4], 256
    $region17: #{tpu_custom_call.1} parent=1 // pred_fallthru
      _
    %38 = vsyncpa [#allocation3], 1
    %39 = vsyncpa [#allocation4], 1

</llo_original>
